<compile_context>
chip_gen: v6e
topology: v6e:2x2x1
jax: 0.10.0
libtpu: 0.0.40
codegen_flags: <defaults>
</compile_context>

<pallas_src>
import functools

import jax
import jax.numpy as jnp
from jax import lax
from jax.experimental import pallas as pl
from jax.experimental.pallas import tpu as pltpu


_LANE = 128
_SUBLANE = 8


def _round_up(n, m):
    return ((n + m - 1) // m) * m


def tv_loss_ref(x, tv_loss_weight=1.0):
    """Pure-JAX reference matching the PyTorch semantics exactly."""
    b, c, h, w = x.shape
    count_h = c * (h - 1) * w
    count_w = c * h * (w - 1)
    h_tv = jnp.sum((x[:, :, 1:, :] - x[:, :, : h - 1, :]) ** 2)
    w_tv = jnp.sum((x[:, :, :, 1:] - x[:, :, :, : w - 1]) ** 2)
    return tv_loss_weight * 2.0 * (h_tv / count_h + w_tv / count_w) / b


def _vmem_capacity_bytes():
    try:
        return int(pltpu.get_tpu_info().vmem_capacity_bytes)
    except Exception:
        return 64 * 1024 * 1024  # conservative: v7x per-TensorCore VMEM


def _choose_plane_block(planes, hwp, itemsize, vmem_budget):
    """Largest plane-block whose *tiled* VMEM footprint fits the budget."""
    # Per-plane tiled bytes: double-buffered input row + f32 cast copy +
    # two rolled copies + two masked-diff temporaries (conservative).
    per_plane = 2 * hwp * itemsize + 5 * hwp * 4
    fixed = 2 * _SUBLANE * hwp * 4              # the two (8, hwp) accumulators
    avail = max(vmem_budget - fixed, per_plane * _SUBLANE)
    p_max = max(_SUBLANE, (avail // per_plane) // _SUBLANE * _SUBLANE)
    if planes <= p_max:
        return planes, False                    # single step, full extent
    # Prefer an 8-multiple divisor of the plane count: no ragged tail, no
    # wrapper padding, no in-kernel plane masking.
    for cand in range(p_max, 0, -_SUBLANE):
        if planes % cand == 0:
            return cand, False
    return p_max, True                          # ragged tail, masked in-kernel


def _tv_kernel(x_ref, out_ref, acc_h_ref, acc_w_ref, *,
               w, hw, planes, p_block, ragged, scale_h, scale_w):
    step = pl.program_id(0)
    hwp = x_ref.shape[1]

    @pl.when(step == 0)
    def _init():
        acc_h_ref[...] = jnp.zeros_like(acc_h_ref)
        acc_w_ref[...] = jnp.zeros_like(acc_w_ref)

    x = x_ref[...].astype(jnp.float32)          # (p_block, hwp)

    if ragged:
        # Planes past the true plane count hold undefined data; zero them
        # (zero rows contribute nothing to either TV term).
        plane_idx = step * p_block + lax.broadcasted_iota(jnp.int32, x.shape, 0)
        x = jnp.where(plane_idx < planes, x, 0.0)

    lane = lax.broadcasted_iota(jnp.int32, x.shape, 1)

    # Vertical neighbour (flat index i -> i + W): a lane roll keeps the shift
    # on the XLU instead of forcing an offset-slice relayout.  Positions with
    # no valid neighbour (last image row, lane padding, wrap-around) are
    # masked out before squaring.
    xv = pltpu.roll(x, shift=hwp - w, axis=1)       # xv[i] = x[(i + w) % hwp]
    dh = jnp.where(lane < hw - w, xv - x, 0.0)

    # Horizontal neighbour (flat index i -> i + 1), masked at each image row's
    # last column and at the lane-padding tail.
    xh = pltpu.roll(x, shift=hwp - 1, axis=1)       # xh[i] = x[(i + 1) % hwp]
    dw = jnp.where((lane % w != w - 1) & (lane < hw), xh - x, 0.0)

    dh2 = dh * dh
    dw2 = dw * dw

    # Lane-preserving partial reduction into aligned (8, hwp) accumulators:
    # fold plane groups of 8 with whole-vreg VALU adds; defer the
    # cross-sublane / cross-lane reduce to the epilogue.
    if p_block % _SUBLANE == 0:
        acc_h_ref[...] += dh2.reshape(p_block // _SUBLANE, _SUBLANE, hwp).sum(axis=0)
        acc_w_ref[...] += dw2.reshape(p_block // _SUBLANE, _SUBLANE, hwp).sum(axis=0)
    else:
        acc_h_ref[0:1, :] += dh2.sum(axis=0, keepdims=True)
        acc_w_ref[0:1, :] += dw2.sum(axis=0, keepdims=True)

    @pl.when(step == pl.num_programs(0) - 1)
    def _finalize():
        h_tv = jnp.sum(acc_h_ref[...])
        w_tv = jnp.sum(acc_w_ref[...])
        loss = h_tv * scale_h + w_tv * scale_w
        out_ref[...] = jnp.broadcast_to(loss, out_ref.shape).astype(out_ref.dtype)


def tv_loss(x, tv_loss_weight=1.0):
    """Pallas TPU implementation of TVLoss.forward for NCHW input x."""
    b, c, h, w = x.shape
    if h < 2 or w < 2:
        # Degenerate spatial dim: count_h or count_w is zero.  Match PyTorch's
        # divide-by-zero result without allocating zero-sized Pallas buffers.
        return tv_loss_ref(x, tv_loss_weight)

    count_h = c * (h - 1) * w
    count_w = c * h * (w - 1)
    # Fold normalization into Python-time constants (no runtime divides).
    scale_h = 2.0 * float(tv_loss_weight) / (count_h * b)
    scale_w = 2.0 * float(tv_loss_weight) / (count_w * b)

    planes = b * c
    hw = h * w
    hwp = _round_up(hw, _LANE)                  # lane-dense row width

    vmem_cap = _vmem_capacity_bytes()
    # Leave headroom (~3/4 of physical VMEM) for compiler scratch and the
    # pipeline's second input buffer: ~48 MiB on v7x, ~96 MiB on v5e/v6e.
    vmem_limit = int(min(vmem_cap * 3 // 4, 100 * 1024 * 1024))

    p_block, ragged = _choose_plane_block(planes, hwp, x.dtype.itemsize, vmem_limit)
    steps = -(-planes // p_block)

    x_flat = x.reshape(planes, hw)
    if hwp != hw:
        # Lane-pad the flattened rows (only when H*W is not already a multiple
        # of 128); padded lanes are masked inside the kernel.
        x_flat = jnp.pad(x_flat, ((0, 0), (0, hwp - hw)))

    kernel = functools.partial(
        _tv_kernel, w=w, hw=hw, planes=planes, p_block=p_block,
        ragged=ragged, scale_h=scale_h, scale_w=scale_w)

    out = pl.pallas_call(
        kernel,
        out_shape=jax.ShapeDtypeStruct((_SUBLANE, _LANE), jnp.float32),
        grid_spec=pltpu.PrefetchScalarGridSpec(
            num_scalar_prefetch=0,
            grid=(steps,),
            in_specs=[pl.BlockSpec((p_block, hwp), lambda i: (i, 0))],
            out_specs=pl.BlockSpec((_SUBLANE, _LANE), lambda i: (0, 0)),
            scratch_shapes=[
                pltpu.VMEM((_SUBLANE, hwp), jnp.float32),  # vertical-term acc
                pltpu.VMEM((_SUBLANE, hwp), jnp.float32),  # horizontal-term acc
            ],
        ),
        compiler_params=pltpu.CompilerParams(
            dimension_semantics=("arbitrary",),
            vmem_limit_bytes=vmem_limit,
        ),
    )(x_flat)

    return out[0, 0]


if __name__ == "__main__":
    key = jax.random.PRNGKey(0)
    # Small NCHW batch consistent with the module.
    x = jax.random.normal(key, (2, 4, 16, 16), dtype=jnp.float32)

    out = jax.block_until_ready(tv_loss(x, tv_loss_weight=1.0))
    ref = jax.block_until_ready(tv_loss_ref(x, tv_loss_weight=1.0))

    assert jnp.allclose(out, ref, rtol=1e-5, atol=1e-5), (out, ref)
    print("KERNEL_OK")
</pallas_src>

<mosaic_0001>
module attributes {stable_mosaic.version = 11 : i64} {
  func.func @_tv_kernel(%arg0: i32, %arg1: memref<8x256xf32, #tpu.memory_space<vmem>>, %arg2: memref<8x128xf32, #tpu.memory_space<vmem>>, %arg3: memref<8x256xf32, #tpu.memory_space<vmem>>, %arg4: memref<8x256xf32, #tpu.memory_space<vmem>>) attributes {dimension_semantics = [#tpu.dimension_semantics<arbitrary>], iteration_bounds = array<i64: 1>, scalar_prefetch = 0 : i64, scratch_operands = 2 : i64, tpu.core_type = #tpu.core_type<tc>, window_params = [{transform_indices = @transform_0, window_bounds = array<i64: 8, 256>}, {pipeline_mode = #tpu.pipeline_mode<synchronous>, transform_indices = @transform_1, window_bounds = array<i64: 8, 128>}]} {
    %c0_i32 = arith.constant 0 : i32
    %0 = arith.cmpi eq, %arg0, %c0_i32 : i32
    %1 = arith.extui %0 : i1 to i32
    %c0_i32_0 = arith.constant 0 : i32
    %2 = arith.cmpi ne, %1, %c0_i32_0 : i32
    scf.if %2 {
      %cst_20 = arith.constant 0.000000e+00 : f32
      %51 = vector.broadcast %cst_20 : f32 to vector<8x256xf32>
      %c0_21 = arith.constant 0 : index
      %c0_22 = arith.constant 0 : index
      %52 = vector.load %arg3[%c0_21, %c0_22] : memref<8x256xf32, #tpu.memory_space<vmem>>, vector<8x256xf32>
      tpu.vector_store %arg3[%c0_21, %c0_22], %51 {strides = array<i32>} : memref<8x256xf32, #tpu.memory_space<vmem>>, vector<8x256xf32>,
      %cst_23 = arith.constant 0.000000e+00 : f32
      %53 = vector.broadcast %cst_23 : f32 to vector<8x256xf32>
      %c0_24 = arith.constant 0 : index
      %c0_25 = arith.constant 0 : index
      %54 = vector.load %arg4[%c0_24, %c0_25] : memref<8x256xf32, #tpu.memory_space<vmem>>, vector<8x256xf32>
      tpu.vector_store %arg4[%c0_24, %c0_25], %53 {strides = array<i32>} : memref<8x256xf32, #tpu.memory_space<vmem>>, vector<8x256xf32>,
    } else {
    }
    %c0 = arith.constant 0 : index
    %c0_1 = arith.constant 0 : index
    %3 = vector.load %arg1[%c0, %c0_1] : memref<8x256xf32, #tpu.memory_space<vmem>>, vector<8x256xf32>
    %4 = tpu.iota {dimensions = array<i32: 1>} : vector<8x256xi32>
    %c240_i32 = arith.constant 240 : i32
    %5 = tpu.dynamic_rotate %3 by %c240_i32 dim 1 : vector<8x256xf32>, i32 -> vector<8x256xf32>
    %c240_i32_2 = arith.constant 240 : i32
    %6 = vector.broadcast %c240_i32_2 : i32 to vector<8x256xi32>
    %7 = arith.cmpi slt, %4, %6 : vector<8x256xi32>
    %8 = arith.subf %5, %3 : vector<8x256xf32>
    %cst = arith.constant 0.000000e+00 : f32
    %9 = vector.broadcast %cst : f32 to vector<8x256xf32>
    %10 = arith.select %7, %8, %9 : vector<8x256xi1>, vector<8x256xf32>
    %c255_i32 = arith.constant 255 : i32
    %11 = tpu.dynamic_rotate %3 by %c255_i32 dim 1 : vector<8x256xf32>, i32 -> vector<8x256xf32>
    %c16_i32 = arith.constant 16 : i32
    %c0_i32_3 = arith.constant 0 : i32
    %12 = arith.cmpi eq, %c16_i32, %c0_i32_3 : i32
    %c1_i32 = arith.constant 1 : i32
    %13 = arith.select %12, %c1_i32, %c16_i32 : i32
    %14 = vector.broadcast %13 : i32 to vector<8x256xi32>
    %15 = arith.remsi %4, %14 : vector<8x256xi32>
    %c0_i32_4 = arith.constant 0 : i32
    %16 = vector.broadcast %c0_i32_4 : i32 to vector<8x256xi32>
    %17 = arith.cmpi ne, %15, %16 : vector<8x256xi32>
    %c0_i32_5 = arith.constant 0 : i32
    %18 = vector.broadcast %c0_i32_5 : i32 to vector<8x256xi32>
    %19 = arith.cmpi slt, %15, %18 : vector<8x256xi32>
    %c0_i32_6 = arith.constant 0 : i32
    %20 = arith.cmpi slt, %13, %c0_i32_6 : i32
    %21 = vector.broadcast %20 : i1 to vector<8x256xi1>
    %22 = vector.broadcast %21 : vector<8x256xi1> to vector<8x256xi1>
    %23 = arith.xori %19, %22 : vector<8x256xi1>
    %24 = arith.andi %23, %17 : vector<8x256xi1>
    %25 = vector.broadcast %13 : i32 to vector<8x256xi32>
    %26 = arith.addi %15, %25 : vector<8x256xi32>
    %27 = arith.select %24, %26, %15 : vector<8x256xi1>, vector<8x256xi32>
    %c15_i32 = arith.constant 15 : i32
    %28 = vector.broadcast %c15_i32 : i32 to vector<8x256xi32>
    %29 = arith.cmpi ne, %27, %28 : vector<8x256xi32>
    %c256_i32 = arith.constant 256 : i32
    %30 = vector.broadcast %c256_i32 : i32 to vector<8x256xi32>
    %31 = arith.cmpi slt, %4, %30 : vector<8x256xi32>
    %32 = arith.andi %29, %31 : vector<8x256xi1>
    %33 = arith.subf %11, %3 : vector<8x256xf32>
    %cst_7 = arith.constant 0.000000e+00 : f32
    %34 = vector.broadcast %cst_7 : f32 to vector<8x256xf32>
    %35 = arith.select %32, %33, %34 : vector<8x256xi1>, vector<8x256xf32>
    %36 = arith.mulf %10, %10 : vector<8x256xf32>
    %37 = arith.mulf %35, %35 : vector<8x256xf32>
    %c0_8 = arith.constant 0 : index
    %c0_9 = arith.constant 0 : index
    %38 = vector.load %arg3[%c0_8, %c0_9] : memref<8x256xf32, #tpu.memory_space<vmem>>, vector<8x256xf32>
    %39 = vector.shape_cast %36 : vector<8x256xf32> to vector<1x8x256xf32>
    %cst_10 = arith.constant dense<0.000000e+00> : vector<8x256xf32>
    %40 = vector.multi_reduction <add>, %39, %cst_10 [0] : vector<1x8x256xf32> to vector<8x256xf32>
    %41 = arith.addf %38, %40 : vector<8x256xf32>
    %c0_11 = arith.constant 0 : index
    %c0_12 = arith.constant 0 : index
    %42 = vector.load %arg3[%c0_11, %c0_12] : memref<8x256xf32, #tpu.memory_space<vmem>>, vector<8x256xf32>
    tpu.vector_store %arg3[%c0_11, %c0_12], %41 {strides = array<i32>} : memref<8x256xf32, #tpu.memory_space<vmem>>, vector<8x256xf32>,
    %c0_13 = arith.constant 0 : index
    %c0_14 = arith.constant 0 : index
    %43 = vector.load %arg4[%c0_13, %c0_14] : memref<8x256xf32, #tpu.memory_space<vmem>>, vector<8x256xf32>
    %44 = vector.shape_cast %37 : vector<8x256xf32> to vector<1x8x256xf32>
    %cst_15 = arith.constant dense<0.000000e+00> : vector<8x256xf32>
    %45 = vector.multi_reduction <add>, %44, %cst_15 [0] : vector<1x8x256xf32> to vector<8x256xf32>
    %46 = arith.addf %43, %45 : vector<8x256xf32>
    %c0_16 = arith.constant 0 : index
    %c0_17 = arith.constant 0 : index
    %47 = vector.load %arg4[%c0_16, %c0_17] : memref<8x256xf32, #tpu.memory_space<vmem>>, vector<8x256xf32>
    tpu.vector_store %arg4[%c0_16, %c0_17], %46 {strides = array<i32>} : memref<8x256xf32, #tpu.memory_space<vmem>>, vector<8x256xf32>,
    %c0_i32_18 = arith.constant 0 : i32
    %48 = arith.cmpi eq, %arg0, %c0_i32_18 : i32
    %49 = arith.extui %48 : i1 to i32
    %c0_i32_19 = arith.constant 0 : i32
    %50 = arith.cmpi ne, %49, %c0_i32_19 : i32
    scf.if %50 {
      %c0_20 = arith.constant 0 : index
      %c0_21 = arith.constant 0 : index
      %51 = vector.load %arg3[%c0_20, %c0_21] : memref<8x256xf32, #tpu.memory_space<vmem>>, vector<8x256xf32>
      %52 = vector.shape_cast %51 : vector<8x256xf32> to vector<1x8x256xf32>
      %cst_22 = arith.constant dense<0.000000e+00> : vector<1xf32>
      %53 = vector.multi_reduction <add>, %52, %cst_22 [1, 2] : vector<1x8x256xf32> to vector<1xf32>
      %54 = vector.shape_cast %53 : vector<1xf32> to vector<1x1x1xf32>
      %55 = vector.extract %54[0, 0, 0] : f32 from vector<1x1x1xf32>
      %c0_23 = arith.constant 0 : index
      %c0_24 = arith.constant 0 : index
      %56 = vector.load %arg4[%c0_23, %c0_24] : memref<8x256xf32, #tpu.memory_space<vmem>>, vector<8x256xf32>
      %57 = vector.shape_cast %56 : vector<8x256xf32> to vector<1x8x256xf32>
      %cst_25 = arith.constant dense<0.000000e+00> : vector<1xf32>
      %58 = vector.multi_reduction <add>, %57, %cst_25 [1, 2] : vector<1x8x256xf32> to vector<1xf32>
      %59 = vector.shape_cast %58 : vector<1xf32> to vector<1x1x1xf32>
      %60 = vector.extract %59[0, 0, 0] : f32 from vector<1x1x1xf32>
      %cst_26 = arith.constant 0.00104166672 : f32
      %61 = arith.mulf %55, %cst_26 : f32
      %cst_27 = arith.constant 0.00104166672 : f32
      %62 = arith.mulf %60, %cst_27 : f32
      %63 = arith.addf %61, %62 : f32
      %64 = vector.broadcast %63 : f32 to vector<8x128xf32>
      %c0_28 = arith.constant 0 : index
      %c0_29 = arith.constant 0 : index
      %65 = vector.load %arg2[%c0_28, %c0_29] : memref<8x128xf32, #tpu.memory_space<vmem>>, vector<8x128xf32>
      tpu.vector_store %arg2[%c0_28, %c0_29], %64 {strides = array<i32>} : memref<8x128xf32, #tpu.memory_space<vmem>>, vector<8x128xf32>,
    } else {
    }
    return
  }
  func.func @transform_0(%arg0: i32) -> (i32, i32) {
    %c0_i32 = arith.constant 0 : i32
    %c0_i32_0 = arith.constant 0 : i32
    return %arg0, %c0_i32 : i32, i32
  }
  func.func @transform_1(%arg0: i32) -> (i32, i32) {
    %c0_i32 = arith.constant 0 : i32
    %c0_i32_0 = arith.constant 0 : i32
    %c0_i32_1 = arith.constant 0 : i32
    return %c0_i32, %c0_i32_0 : i32, i32
  }
}

</mosaic_0001>

<llo_original>
// kernel: tpu_custom_call.1
$region0: #{tpu_custom_call.1}
  #allocation0 [shape = 'u32[]', space=smem, size = 0x4, offset = 0x4, fixed_abs, tag = 'smem constant byte address 0x4 - core index']
  #allocation1 [shape = 'u32[144,128]{1,0:T(1,128)}', space=vmem, size = 0x12000, scoped, tag = 'internal scratch']
  #allocation2 [shape = 'f32[8,256]{1,0:T(8,128)}', space=vmem, size = 0x2000, scoped, tag = 'scratch operand']
  #allocation3 [shape = 'f32[8,256]{1,0:T(8,128)}', space=vmem, size = 0x2000, scoped, tag = 'scratch operand']
  %s0 = inlined_call_operand.hbm [shape: f32[8,256], index: 0, kind: input, shape index: {}]
  %s1 = inlined_call_operand.hbm [shape: f32[8,128], index: 1, kind: output, shape index: {}]
  %s2 = sld [smem:[#allocation0]]
  $region26: #{tpu_custom_call.1} parent=0
    _
  %s4 = ssub.s32 1, %s2
  %s5 = scalar_select 0, %s4, %s2
  $region1: #{tpu_custom_call.1} parent=0
    #allocation4 [shape = 'u8[8192]{0}', space=vmem, size = 0x2000, scoped, tag = 'input window, operand 0, single buffered']
    #allocation5 [shape = 's32[1]{0}', space=sflag, size = 0x4, scoped, tag = 'scoped memory for tpu_custom_call.1']
    #allocation6 [shape = 's32[1]{0}', space=sflag, size = 0x4, scoped, tag = 'scoped memory for tpu_custom_call.1']
    #allocation7 [shape = 'u8[4096]{0}', space=vmem, size = 0x1000, scoped, tag = 'output window, operand 0, single buffered']
    %6 = vsyncpa [#allocation5], 0
    %7 = vsyncpa [#allocation6], 0
    // Predicated region
    $region2: #{tpu_custom_call.1} parent=1 // pred_check
      _
    $region3: #{tpu_custom_call.1} parent=1 // pred_check_branch
      %9 = sbr.rel (0) target = $region5
    $region4: #{tpu_custom_call.1} parent=1 // pred_region
      %s11 = ssub.s32 256, 256
      %12 = vsyncadd [#allocation5], %s11
      %s14 = sshll.u32 [#allocation4], 4
      %s15 = int_to_ptr.vmem [resolvable:$true] %s14
      %17 = dma.hbm_to_vmem [thread:$0]  %s0, 256, %s15, [#allocation5]
    $region5: #{tpu_custom_call.1} parent=1 // pred_fallthru
      _
    // Predicated region
    $region6: #{tpu_custom_call.1} parent=1 // pred_check
      _
    $region7: #{tpu_custom_call.1} parent=1 // pred_check_branch
      %19 = sbr.rel (0) target = $region9
    $region8: #{tpu_custom_call.1} parent=1 // pred_region
      %20 = dma.done [#allocation5], 256
    $region9: #{tpu_custom_call.1} parent=1 // pred_fallthru
      _
    %p21 = scmp.eq.s32.totalorder 0, 0
    // Predicated region
    $region10: #{tpu_custom_call.1} parent=1 // pred_check
      %p22 = pneg %p21
    $region11: #{tpu_custom_call.1} parent=1 // pred_check_branch
      %24 = sbr.rel (%p22) target = $region13
    $region12: #{tpu_custom_call.1} parent=1 // pred_region
      %25 = vst [vmem:[#allocation2] sm:$0xff] 0.0
      %26 = vst [vmem:[#allocation2 + $0x8] sm:$0xff] 0.0
      %27 = vst [vmem:[#allocation3] sm:$0xff] 0.0
      %28 = vst [vmem:[#allocation3 + $0x8] sm:$0xff] 0.0
    $region13: #{tpu_custom_call.1} parent=1 // pred_fallthru
      _
    %v29 = vld [vmem:[#allocation4] sm:$0xff]
    %v30 = vld [vmem:[#allocation4 + $0x8] sm:$0xff]
    %v31 = vlaneseq
    %v32 = vand.u32 %v31, 127
    %v33 = vadd.s32 %v32, 128
    %34 = vrot.lane.b32.xlu0 %v29, 112
    %v35 = vpop.permute.xlu0 %34
    %36 = vrot.lane.b32.xlu0 %v30, 112
    %v37 = vpop.permute.xlu0 %36
    %vm38 = vcmp.lt.s32.totalorder %v32, 112
    %v39 = vsel %vm38, %v35, %v37
    %v40 = vsel %vm38, %v37, %v35
    %vm41 = vcmp.lt.s32.totalorder %v32, 240
    %vm42 = vcmp.lt.s32.totalorder %v33, 240
    %v43 = vsub.f32 %v39, %v29
    %v44 = vsub.f32 %v40, %v30
    %v45 = vsel %vm41, %v43, 0.0
    %v46 = vsel %vm42, %v44, 0.0
    %47 = vrot.lane.b32.xlu0 %v29, 127
    %v48 = vpop.permute.xlu0 %47
    %49 = vrot.lane.b32.xlu0 %v30, 127
    %v50 = vpop.permute.xlu0 %49
    %vm51 = vcmp.lt.s32.totalorder %v32, 127
    %v52 = vsel %vm51, %v48, %v50
    %v53 = vsel %vm51, %v50, %v48
    %vm54 = vcmp.lt.s32.totalorder %v32, 0
    %v55 = vsub.s32 0, %v32
    %v56 = vsel %vm54, %v55, %v32
    %v57 = vshrl.u32 %v56, 4
    %v58 = vand.u32 %v56, 15
    %v59 = vsub.s32 0, %v58
    %v60 = vsel %vm54, %v59, %v58
    %vm61 = vcmp.lt.s32.totalorder %v33, 0
    %v62 = vsub.s32 0, %v33
    %v63 = vsel %vm61, %v62, %v33
    %v64 = vshrl.u32 %v63, 4
    %v65 = vand.u32 %v63, 15
    %v66 = vsub.s32 0, %v65
    %v67 = vsel %vm61, %v66, %v65
    %vm68 = vcmp.ne.s32.totalorder %v60, 0
    %vm69 = vcmp.ne.s32.totalorder %v67, 0
    %vm70 = vcmp.lt.s32.totalorder %v60, 0
    %vm71 = vcmp.lt.s32.totalorder %v67, 0
    %vm72 = vmand %vm70, %vm68
    %vm73 = vmand %vm71, %vm69
    %v74 = vadd.s32 %v60, 16
    %v75 = vadd.s32 %v67, 16
    %v76 = vsel %vm72, %v74, %v60
    %v77 = vsel %vm73, %v75, %v67
    %vm78 = vcmp.ne.s32.totalorder %v76, 15
    %vm79 = vcmp.ne.s32.totalorder %v77, 15
    %vm80 = vcmp.lt.s32.totalorder %v32, 256
    %vm81 = vcmp.lt.s32.totalorder %v33, 256
    %vm82 = vmand %vm78, %vm80
    %vm83 = vmand %vm79, %vm81
    %v84 = vsub.f32 %v52, %v29
    %v85 = vsub.f32 %v53, %v30
    %v86 = vsel %vm82, %v84, 0.0
    %v87 = vsel %vm83, %v85, 0.0
    %v88 = vmul.f32 %v45, %v45
    %v89 = vmul.f32 %v46, %v46
    %v90 = vmul.f32 %v86, %v86
    %v91 = vmul.f32 %v87, %v87
    %v92 = vld [vmem:[#allocation2] sm:$0xff]
    %v93 = vld [vmem:[#allocation2 + $0x8] sm:$0xff]
    %v94 = vadd.f32 %v88, 0.0
    %v95 = vadd.f32 %v89, 0.0
    %v96 = vadd.f32 %v92, %v94
    %v97 = vadd.f32 %v93, %v95
    %98 = vst [vmem:[#allocation2] sm:$0xff] %v96
    %99 = vst [vmem:[#allocation2 + $0x8] sm:$0xff] %v97
    %v100 = vld [vmem:[#allocation3] sm:$0xff]
    %v101 = vld [vmem:[#allocation3 + $0x8] sm:$0xff]
    %v102 = vadd.f32 %v90, 0.0
    %v103 = vadd.f32 %v91, 0.0
    %v104 = vadd.f32 %v100, %v102
    %v105 = vadd.f32 %v101, %v103
    %106 = vst [vmem:[#allocation3] sm:$0xff] %v104
    %107 = vst [vmem:[#allocation3 + $0x8] sm:$0xff] %v105
    // Predicated region
    $region14: #{tpu_custom_call.1} parent=1 // pred_check
      %p108 = pneg %p21
    $region15: #{tpu_custom_call.1} parent=1 // pred_check_branch
      %110 = sbr.rel (%p108) target = $region17
    $region16: #{tpu_custom_call.1} parent=1 // pred_region
      %v111 = vld [vmem:[#allocation2] sm:$0xff]
      %v112 = vld [vmem:[#allocation2 + $0x8] sm:$0xff]
      %v113 = vadd.f32 %v111, %v112
      %114 = vadd.xlane.f32.xlu0 %v113
      %v115 = vpop.xlane.xlu0 %114
      %v116 = vrot.slane %v115, 4
      %v117 = vadd.f32 %v115, %v116
      %v118 = vrot.slane %v117, 2
      %v119 = vadd.f32 %v117, %v118
      %v120 = vrot.slane %v119, 1
      %v121 = vadd.f32 %v119, %v120
      %s122 = vtos %v121
      %v123 = vld [vmem:[#allocation3] sm:$0xff]
      %v124 = vld [vmem:[#allocation3 + $0x8] sm:$0xff]
      %v125 = vadd.f32 %v123, %v124
      %126 = vadd.xlane.f32.xlu0 %v125
      %v127 = vpop.xlane.xlu0 %126
      %v128 = vrot.slane %v127, 4
      %v129 = vadd.f32 %v127, %v128
      %v130 = vrot.slane %v129, 2
      %v131 = vadd.f32 %v129, %v130
      %v132 = vrot.slane %v131, 1
      %v133 = vadd.f32 %v131, %v132
      %s134 = vtos %v133
      %s135 = smul.f32 %s122, 0.0010416667
      %s136 = smul.f32 %s134, 0.0010416667
      %s137 = sadd.f32 %s135, %s136
      %v138 = vstv %s137
      %139 = vst [vmem:[#allocation7] sm:$0xff] %v138
    $region17: #{tpu_custom_call.1} parent=1 // pred_fallthru
      _
    // Predicated region
    $region18: #{tpu_custom_call.1} parent=1 // pred_check
      _
    $region19: #{tpu_custom_call.1} parent=1 // pred_check_branch
      %141 = sbr.rel (0) target = $region21
    $region20: #{tpu_custom_call.1} parent=1 // pred_region
      %s143 = ssub.s32 128, 128
      %144 = vsyncadd [#allocation6], %s143
      %s146 = sshll.u32 [#allocation7], 4
      %s147 = int_to_ptr.vmem [resolvable:$true] %s146
      %149 = dma.vmem_to_hbm [thread:$0]  %s147, 128, %s1, [#allocation6]
    $region21: #{tpu_custom_call.1} parent=1 // pred_fallthru
      _
    // Predicated region
    $region22: #{tpu_custom_call.1} parent=1 // pred_check
      _
    $region23: #{tpu_custom_call.1} parent=1 // pred_check_branch
      %151 = sbr.rel (0) target = $region25
    $region24: #{tpu_custom_call.1} parent=1 // pred_region
      %152 = dma.done [#allocation6], 128
    $region25: #{tpu_custom_call.1} parent=1 // pred_fallthru
      _
    %153 = vsyncpa [#allocation5], 1
    %154 = vsyncpa [#allocation6], 1

</llo_original>
